<compile_context>
chip_gen: v6e
topology: v6e:2x2x1
jax: 0.10.0
libtpu: 0.0.40
codegen_flags: <defaults>
</compile_context>

<pallas_src>
import math
import jax
import jax.numpy as jnp
from jax.experimental import pallas as pl
from jax.experimental.pallas import tpu as pltpu


# ---------------------------------------------------------------------------
# Pallas kernel: a block of `nb` PrefixNets per grid step.
# ---------------------------------------------------------------------------
def prefixnet_block_kernel(x_ref, w1_ref, b1_ref, w2_ref, b2_ref, o_ref):
    # x_ref : [BL, E]        bf16   (grid-invariant, resident in VMEM)
    # w1_ref: [nb, E, 4H]    bf16   (streamed per block of nets)
    # b1_ref: [nb, Lb, 4H]   f32    (b1 + emb @ W1; Lb == L compact, or B*L pre-tiled)
    # w2_ref: [nb, 4H, E]    bf16   (streamed per block of nets)
    # b2_ref: [N, 1, E]      f32    (ALL nets resident; indexed via program_id)
    # o_ref : [nb, BL, E]    f32
    nb = w1_ref.shape[0]
    BL = x_ref.shape[0]
    Lb = b1_ref.shape[1]
    reps = BL // Lb                                  # static batch-replication factor
    base = pl.program_id(0) * nb
    x = x_ref[...]                                   # [BL, E] bf16

    for j in range(nb):                              # static unroll over nets in the block
        # (x + emb) @ W1 + b1  ==  x @ W1 + (b1 + emb @ W1)   (emb folded offline)
        b1 = b1_ref[j]                               # [Lb, 4H] f32
        if reps > 1:
            # rows of x are batch-major (row = b*L + l) -> repeat the compact bias B times
            b1 = jnp.concatenate([b1] * reps, axis=0)            # [BL, 4H]
        h = jnp.tanh(
            jnp.dot(x, w1_ref[j], preferred_element_type=jnp.float32) + b1
        )                                            # [BL, 4H] f32
        y = (
            jnp.dot(h.astype(jnp.bfloat16), w2_ref[j],
                    preferred_element_type=jnp.float32)
            + b2_ref[base + j]                       # [1, E] broadcast
        )                                            # [BL, E] f32
        o_ref[j] = y.astype(o_ref.dtype)


# ---------------------------------------------------------------------------
# Block-size selection (fit double-buffered streams under a VMEM budget)
# ---------------------------------------------------------------------------
def _block_vmem_bytes(nb, BL, E, H4, Lb, N):
    resident = BL * E * 2 + N * E * 4                       # x (bf16) + b2 (f32)
    per_buf = nb * (E * H4 * 2        # W1 bf16
                    + Lb * H4 * 4     # folded b1 f32
                    + H4 * E * 2      # W2 bf16
                    + BL * E * 4)     # output block f32
    return resident + 2 * per_buf                           # double-buffered pipeline


def _pick_nets_per_block(N, BL, E, H4, Lb, budget):
    divisors = [d for d in range(1, N + 1) if N % d == 0]
    # Prefer the largest block that still leaves >= 2 grid steps (pipelining /
    # megacore), then single-step blocks, then fall back to 1.
    prefer = (sorted([d for d in divisors if N // d >= 2], reverse=True)
              + sorted([d for d in divisors if N // d < 2], reverse=True))
    for nb in prefer:
        if _block_vmem_bytes(nb, BL, E, H4, Lb, N) <= budget:
            return nb
    return 1


# ---------------------------------------------------------------------------
# Wrapper: run N stacked (folded, quantized) PrefixNets on x
# ---------------------------------------------------------------------------
def run_prefix_nets(x, w1, b1e, w2, b2, *, nets_per_block=None,
                    vmem_budget=40 * 1024 * 1024):
    """Run N stacked PrefixNets on x.

    x   : [B, L, E] float32
    w1  : [N, E, 4H]  bf16 (pre-transposed:  y = x @ W1)
    b1e : [N, L, 4H]  f32  (= b1 + emb @ W1)
    w2  : [N, 4H, E]  bf16 (pre-transposed)
    b2  : [N, 1, E]   f32
    returns [N, B, L, E] float32
    """
    N, E, H4 = w1.shape
    B, L, _ = x.shape
    BL = B * L

    # Layout plumbing at the JAX level (free): collapse batch, cast the
    # activation stream to bf16.
    x2 = x.reshape(BL, E).astype(jnp.bfloat16)

    # Compact folded bias is replicated over the batch in-kernel when L is
    # sublane-aligned; otherwise pre-broadcast (safe fallback, costs B x DMA).
    if (L % 8 == 0) or (B == 1):
        b1_in = b1e                                                   # [N, L, 4H]
    else:
        b1_in = jnp.broadcast_to(b1e[:, None], (N, B, L, H4)).reshape(N, BL, H4)
    Lb = b1_in.shape[1]

    nb = nets_per_block if nets_per_block is not None else _pick_nets_per_block(
        N, BL, E, H4, Lb, vmem_budget)
    assert N % nb == 0, "nets_per_block must divide the number of nets"

    out = pl.pallas_call(
        prefixnet_block_kernel,
        out_shape=jax.ShapeDtypeStruct((N, BL, E), jnp.float32),
        grid_spec=pltpu.PrefetchScalarGridSpec(
            num_scalar_prefetch=0,
            grid=(N // nb,),
            in_specs=[
                pl.BlockSpec((BL, E), lambda i: (0, 0)),          # x (resident)
                pl.BlockSpec((nb, E, H4), lambda i: (i, 0, 0)),   # W1 block
                pl.BlockSpec((nb, Lb, H4), lambda i: (i, 0, 0)),  # folded b1 block
                pl.BlockSpec((nb, H4, E), lambda i: (i, 0, 0)),   # W2 block
                pl.BlockSpec((N, 1, E), lambda i: (0, 0, 0)),     # b2 (all nets resident)
            ],
            out_specs=pl.BlockSpec((nb, BL, E), lambda i: (i, 0, 0)),
        ),
        compiler_params=pltpu.CompilerParams(
            dimension_semantics=("parallel",),
            vmem_limit_bytes=48 * 1024 * 1024,   # > default scoped, < v7x physical
        ),
    )(x2, w1, b1_in, w2, b2)

    return out.reshape(N, B, L, E)


# ---------------------------------------------------------------------------
# Parameter init (mirrors PrefixNet.reset_parameters / nn.Linear defaults)
# ---------------------------------------------------------------------------
def _xavier_uniform(key, shape, fan_in, fan_out, dtype=jnp.float32):
    bound = math.sqrt(6.0 / (fan_in + fan_out))
    return jax.random.uniform(key, shape, dtype, -bound, bound)


def _linear_bias(key, shape, fan_in, dtype=jnp.float32):
    bound = 1.0 / math.sqrt(fan_in)
    return jax.random.uniform(key, shape, dtype, -bound, bound)


def make_prefixnet_stack(key, n_nets, length, emb_size, hidden_size):
    """Stacked f32 params for n_nets PrefixNet(length, emb_size, hidden_size).

    Linear weights are stored pre-transposed so y = x @ W (matches torch x @ W.T).
    """
    keys = jax.random.split(key, 5)
    emb = _xavier_uniform(keys[0], (n_nets, length, emb_size), emb_size, length)
    w1 = _xavier_uniform(keys[1], (n_nets, emb_size, hidden_size), emb_size, hidden_size)
    b1 = _linear_bias(keys[2], (n_nets, 1, hidden_size), emb_size)
    w2 = _xavier_uniform(keys[3], (n_nets, hidden_size, emb_size), hidden_size, emb_size)
    b2 = _linear_bias(keys[4], (n_nets, 1, emb_size), hidden_size)
    return emb, w1, b1, w2, b2


def fold_and_quantize(emb, w1, b1, w2, b2, weight_dtype=jnp.bfloat16):
    """Fold emb into the first bias and quantize the big weights.

    (x + emb) @ W1 + b1  ==  x @ W1 + (b1 + emb @ W1);  emb @ W1 is a per-net constant.
    """
    w1q = w1.astype(weight_dtype)
    w2q = w2.astype(weight_dtype)
    b1e = b1 + jnp.einsum(
        "nle,neh->nlh", emb, w1q.astype(jnp.float32), precision="highest"
    )                                                    # [N, L, 4H] f32
    return w1q, b1e.astype(jnp.float32), w2q, b2


# ---------------------------------------------------------------------------
# Model wrapper (encoder nets only — decoder nets are unused in forward())
# ---------------------------------------------------------------------------
class VisualPrefixModelPallas:
    def __init__(self, key, num_encoder_layers, num_decoder_layers,
                 prefix_length, hidden_size, weight_dtype=jnp.bfloat16,
                 nets_per_block=None):
        self.num_encoder_layers = num_encoder_layers
        self.num_decoder_layers = num_decoder_layers
        self.prefix_length = prefix_length
        self.hidden_size = hidden_size
        self.nets_per_block = nets_per_block

        k_enc, _k_dec = jax.random.split(key)
        # encoder key nets (0..L-1) followed by encoder value nets (L..2L-1).
        raw = make_prefixnet_stack(
            k_enc, 2 * num_encoder_layers, prefix_length, hidden_size, 4 * hidden_size
        )
        self.ref_params = raw                       # full-precision copies (testing only)
        self.kernel_params = fold_and_quantize(*raw, weight_dtype=weight_dtype)
        # NOTE: decoder_{key,value}_net exist in the PyTorch module but are never
        # used by forward(); they are intentionally not constructed (saves HBM).

    def forward(self, x):
        out = run_prefix_nets(x, *self.kernel_params,
                              nets_per_block=self.nets_per_block)  # [2*Lenc, B, L, E]
        n = self.num_encoder_layers
        return tuple((out[i], out[n + i]) for i in range(n))


# ---------------------------------------------------------------------------
# Pure-JAX references (for correctness check)
# ---------------------------------------------------------------------------
def prefixnet_ref_f32(x, emb, w1, b1, w2, b2):
    """Original op order, full f32 (mirrors the PyTorch module)."""
    xe = x + emb[None]                                                   # [B, L, E]
    h = jnp.tanh(jnp.einsum("ble,eh->blh", xe, w1, precision="highest") + b1)
    return jnp.einsum("blh,he->ble", h, w2, precision="highest") + b2


def prefixnet_ref_quant(x, w1q, b1e, w2q, b2, B):
    """Mirrors the kernel's quantized/folded math (bf16 operands, f32 accumulate)."""
    L, E = x.shape[1], x.shape[2]
    x2 = x.reshape(B * L, E).astype(jnp.bfloat16).astype(jnp.float32)
    b1_full = jnp.tile(b1e, (B, 1))
    h = jnp.tanh(jnp.dot(x2, w1q.astype(jnp.float32), precision="highest") + b1_full)
    h = h.astype(jnp.bfloat16).astype(jnp.float32)
    y = jnp.dot(h, w2q.astype(jnp.float32), precision="highest") + b2
    return y.reshape(B, L, E)


if __name__ == "__main__":
    # small shapes consistent with the module
    B = 2                 # batch
    L = 8                 # visual_prefix_length
    H = 32                # hidden_size  -> PrefixNet hidden = 4*H = 128
    NUM_ENC = 2
    NUM_DEC = 2

    root = jax.random.PRNGKey(0)
    k_param, k_x = jax.random.split(root)

    model = VisualPrefixModelPallas(k_param, NUM_ENC, NUM_DEC, L, H)
    x = jax.random.normal(k_x, (B, L, H), dtype=jnp.float32)

    past = model.forward(x)
    jax.block_until_ready(past)

    emb, w1, b1, w2, b2 = model.ref_params
    w1q, b1e, w2q, b2q = model.kernel_params

    ok = True
    n = NUM_ENC
    for i, (key_out, value_out) in enumerate(past):
        for arr, net in ((key_out, i), (value_out, n + i)):
            assert arr.shape == (B, L, H)
            # tight check vs. the quantized math the kernel is supposed to compute
            ref_q = prefixnet_ref_quant(x, w1q[net], b1e[net], w2q[net], b2q[net], B)
            ok &= bool(jnp.allclose(arr, ref_q, atol=1e-2, rtol=1e-2))
            # loose check vs. the original full-f32 module semantics
            # (covers bf16 weight/activation quantization noise)
            ref_f = prefixnet_ref_f32(x, emb[net], w1[net], b1[net], w2[net], b2[net])
            ok &= bool(jnp.allclose(arr, ref_f, atol=2e-1, rtol=5e-2))

    if ok:
        print("KERNEL_OK")
    else:
        print("MISMATCH")
</pallas_src>

<mosaic_0001>
module attributes {stable_mosaic.version = 11 : i64} {
  func.func @prefixnet_block_kernel(%arg0: i32, %arg1: memref<16x32xbf16, #tpu.memory_space<vmem>>, %arg2: memref<2x32x128xbf16, #tpu.memory_space<vmem>>, %arg3: memref<2x8x128xf32, #tpu.memory_space<vmem>>, %arg4: memref<2x128x32xbf16, #tpu.memory_space<vmem>>, %arg5: memref<4x1x32xf32, #tpu.memory_space<vmem>>, %arg6: memref<2x16x32xf32, #tpu.memory_space<vmem>>) attributes {dimension_semantics = [#tpu.dimension_semantics<parallel>], iteration_bounds = array<i64: 2>, scalar_prefetch = 0 : i64, scratch_operands = 0 : i64, tpu.core_type = #tpu.core_type<tc>, window_params = [{pipeline_mode = #tpu.pipeline_mode<synchronous>, transform_indices = @transform_0, window_bounds = array<i64: 16, 32>}, {transform_indices = @transform_1, window_bounds = array<i64: 2, 32, 128>}, {transform_indices = @transform_2, window_bounds = array<i64: 2, 8, 128>}, {transform_indices = @transform_3, window_bounds = array<i64: 2, 128, 32>}, {pipeline_mode = #tpu.pipeline_mode<synchronous>, transform_indices = @transform_4, window_bounds = array<i64: 4, 1, 32>}, {transform_indices = @transform_5, window_bounds = array<i64: 2, 16, 32>}]} {
    %c2_i32 = arith.constant 2 : i32
    %0 = arith.muli %arg0, %c2_i32 : i32
    %c0 = arith.constant 0 : index
    %c0_0 = arith.constant 0 : index
    %1 = vector.load %arg1[%c0, %c0_0] : memref<16x32xbf16, #tpu.memory_space<vmem>>, vector<16x32xbf16>
    %c0_1 = arith.constant 0 : index
    %c0_2 = arith.constant 0 : index
    %c0_3 = arith.constant 0 : index
    %2 = vector.load %arg3[%c0_1, %c0_2, %c0_3] : memref<2x8x128xf32, #tpu.memory_space<vmem>>, vector<1x8x128xf32>
    %3 = vector.shape_cast %2 : vector<1x8x128xf32> to vector<8x128xf32>
    %4 = tpu.concatenate %3, %3 in 0 : vector<8x128xf32>, vector<8x128xf32> -> vector<16x128xf32>
    %c0_4 = arith.constant 0 : index
    %c0_5 = arith.constant 0 : index
    %c0_6 = arith.constant 0 : index
    %5 = vector.load %arg2[%c0_4, %c0_5, %c0_6] : memref<2x32x128xbf16, #tpu.memory_space<vmem>>, vector<1x32x128xbf16>
    %6 = vector.shape_cast %5 : vector<1x32x128xbf16> to vector<32x128xbf16>
    %cst = arith.constant dense<0.000000e+00> : vector<16x128xf32>
    %7 = tpu.matmul %1, %6, %cst {dimension_numbers = #tpu.dot_dimension_numbers<[1], [0], [0], [1], [0, 0, 1, 1], [], []>} : vector<16x32xbf16>, vector<32x128xbf16>, vector<16x128xf32> -> vector<16x128xf32>
    %8 = arith.addf %7, %4 : vector<16x128xf32>
    %9 = math.tanh %8 : vector<16x128xf32>
    %10 = arith.truncf %9 : vector<16x128xf32> to vector<16x128xbf16>
    %c0_7 = arith.constant 0 : index
    %c0_8 = arith.constant 0 : index
    %c0_9 = arith.constant 0 : index
    %11 = vector.load %arg4[%c0_7, %c0_8, %c0_9] : memref<2x128x32xbf16, #tpu.memory_space<vmem>>, vector<1x128x32xbf16>
    %12 = vector.shape_cast %11 : vector<1x128x32xbf16> to vector<128x32xbf16>
    %cst_10 = arith.constant dense<0.000000e+00> : vector<16x32xf32>
    %13 = tpu.matmul %10, %12, %cst_10 {dimension_numbers = #tpu.dot_dimension_numbers<[1], [0], [0], [1], [0, 0, 1, 1], [], []>} : vector<16x128xbf16>, vector<128x32xbf16>, vector<16x32xf32> -> vector<16x32xf32>
    %c0_i32 = arith.constant 0 : i32
    %14 = arith.addi %0, %c0_i32 : i32
    %15 = arith.index_cast %14 : i32 to index
    %c0_11 = arith.constant 0 : index
    %c0_12 = arith.constant 0 : index
    %16 = vector.load %arg5[%15, %c0_11, %c0_12] : memref<4x1x32xf32, #tpu.memory_space<vmem>>, vector<1x1x32xf32>
    %17 = vector.shape_cast %16 : vector<1x1x32xf32> to vector<1x32xf32>
    %18 = vector.broadcast %17 : vector<1x32xf32> to vector<16x32xf32>
    %19 = arith.addf %13, %18 : vector<16x32xf32>
    %c0_13 = arith.constant 0 : index
    %c0_14 = arith.constant 0 : index
    %c0_15 = arith.constant 0 : index
    %20 = vector.load %arg6[%c0_13, %c0_14, %c0_15] : memref<2x16x32xf32, #tpu.memory_space<vmem>>, vector<1x16x32xf32>
    %21 = vector.shape_cast %20 : vector<1x16x32xf32> to vector<16x32xf32>
    %22 = vector.shape_cast %19 : vector<16x32xf32> to vector<1x16x32xf32>
    tpu.vector_store %arg6[%c0_13, %c0_14, %c0_15], %22 {strides = array<i32>} : memref<2x16x32xf32, #tpu.memory_space<vmem>>, vector<1x16x32xf32>,
    %c1 = arith.constant 1 : index
    %c0_16 = arith.constant 0 : index
    %c0_17 = arith.constant 0 : index
    %23 = vector.load %arg3[%c1, %c0_16, %c0_17] : memref<2x8x128xf32, #tpu.memory_space<vmem>>, vector<1x8x128xf32>
    %24 = vector.shape_cast %23 : vector<1x8x128xf32> to vector<8x128xf32>
    %25 = tpu.concatenate %24, %24 in 0 : vector<8x128xf32>, vector<8x128xf32> -> vector<16x128xf32>
    %c1_18 = arith.constant 1 : index
    %c0_19 = arith.constant 0 : index
    %c0_20 = arith.constant 0 : index
    %26 = vector.load %arg2[%c1_18, %c0_19, %c0_20] : memref<2x32x128xbf16, #tpu.memory_space<vmem>>, vector<1x32x128xbf16>
    %27 = vector.shape_cast %26 : vector<1x32x128xbf16> to vector<32x128xbf16>
    %cst_21 = arith.constant dense<0.000000e+00> : vector<16x128xf32>
    %28 = tpu.matmul %1, %27, %cst_21 {dimension_numbers = #tpu.dot_dimension_numbers<[1], [0], [0], [1], [0, 0, 1, 1], [], []>} : vector<16x32xbf16>, vector<32x128xbf16>, vector<16x128xf32> -> vector<16x128xf32>
    %29 = arith.addf %28, %25 : vector<16x128xf32>
    %30 = math.tanh %29 : vector<16x128xf32>
    %31 = arith.truncf %30 : vector<16x128xf32> to vector<16x128xbf16>
    %c1_22 = arith.constant 1 : index
    %c0_23 = arith.constant 0 : index
    %c0_24 = arith.constant 0 : index
    %32 = vector.load %arg4[%c1_22, %c0_23, %c0_24] : memref<2x128x32xbf16, #tpu.memory_space<vmem>>, vector<1x128x32xbf16>
    %33 = vector.shape_cast %32 : vector<1x128x32xbf16> to vector<128x32xbf16>
    %cst_25 = arith.constant dense<0.000000e+00> : vector<16x32xf32>
    %34 = tpu.matmul %31, %33, %cst_25 {dimension_numbers = #tpu.dot_dimension_numbers<[1], [0], [0], [1], [0, 0, 1, 1], [], []>} : vector<16x128xbf16>, vector<128x32xbf16>, vector<16x32xf32> -> vector<16x32xf32>
    %c1_i32 = arith.constant 1 : i32
    %35 = arith.addi %0, %c1_i32 : i32
    %36 = arith.index_cast %35 : i32 to index
    %c0_26 = arith.constant 0 : index
    %c0_27 = arith.constant 0 : index
    %37 = vector.load %arg5[%36, %c0_26, %c0_27] : memref<4x1x32xf32, #tpu.memory_space<vmem>>, vector<1x1x32xf32>
    %38 = vector.shape_cast %37 : vector<1x1x32xf32> to vector<1x32xf32>
    %39 = vector.broadcast %38 : vector<1x32xf32> to vector<16x32xf32>
    %40 = arith.addf %34, %39 : vector<16x32xf32>
    %c1_28 = arith.constant 1 : index
    %c0_29 = arith.constant 0 : index
    %c0_30 = arith.constant 0 : index
    %41 = vector.load %arg6[%c1_28, %c0_29, %c0_30] : memref<2x16x32xf32, #tpu.memory_space<vmem>>, vector<1x16x32xf32>
    %42 = vector.shape_cast %41 : vector<1x16x32xf32> to vector<16x32xf32>
    %43 = vector.shape_cast %40 : vector<16x32xf32> to vector<1x16x32xf32>
    tpu.vector_store %arg6[%c1_28, %c0_29, %c0_30], %43 {strides = array<i32>} : memref<2x16x32xf32, #tpu.memory_space<vmem>>, vector<1x16x32xf32>,
    return
  }
  func.func @transform_0(%arg0: i32) -> (i32, i32) {
    %c0_i32 = arith.constant 0 : i32
    %c0_i32_0 = arith.constant 0 : i32
    %c0_i32_1 = arith.constant 0 : i32
    return %c0_i32, %c0_i32_0 : i32, i32
  }
  func.func @transform_1(%arg0: i32) -> (i32, i32, i32) {
    %c0_i32 = arith.constant 0 : i32
    %c0_i32_0 = arith.constant 0 : i32
    %c0_i32_1 = arith.constant 0 : i32
    return %arg0, %c0_i32, %c0_i32_0 : i32, i32, i32
  }
  func.func @transform_2(%arg0: i32) -> (i32, i32, i32) {
    %c0_i32 = arith.constant 0 : i32
    %c0_i32_0 = arith.constant 0 : i32
    %c0_i32_1 = arith.constant 0 : i32
    return %arg0, %c0_i32, %c0_i32_0 : i32, i32, i32
  }
  func.func @transform_3(%arg0: i32) -> (i32, i32, i32) {
    %c0_i32 = arith.constant 0 : i32
    %c0_i32_0 = arith.constant 0 : i32
    %c0_i32_1 = arith.constant 0 : i32
    return %arg0, %c0_i32, %c0_i32_0 : i32, i32, i32
  }
  func.func @transform_4(%arg0: i32) -> (i32, i32, i32) {
    %c0_i32 = arith.constant 0 : i32
    %c0_i32_0 = arith.constant 0 : i32
    %c0_i32_1 = arith.constant 0 : i32
    %c0_i32_2 = arith.constant 0 : i32
    return %c0_i32, %c0_i32_0, %c0_i32_1 : i32, i32, i32
  }
  func.func @transform_5(%arg0: i32) -> (i32, i32, i32) {
    %c0_i32 = arith.constant 0 : i32
    %c0_i32_0 = arith.constant 0 : i32
    %c0_i32_1 = arith.constant 0 : i32
    return %arg0, %c0_i32, %c0_i32_0 : i32, i32, i32
  }
}

</mosaic_0001>

<llo_original>
// kernel: tpu_custom_call.1
$region0: #{tpu_custom_call.1}
  #allocation0 [shape = 'u32[]', space=smem, size = 0x4, offset = 0x4, fixed_abs, tag = 'smem constant byte address 0x4 - core index']
  #allocation1 [shape = 'u32[144,128]{1,0:T(1,128)}', space=vmem, size = 0x12000, scoped, tag = 'internal scratch']
  %s0 = inlined_call_operand.vmem [shape: bf16[16,32], index: 0, kind: input, shape index: {}]
  %s1 = inlined_call_operand.vmem [shape: bf16[4,32,128], index: 1, kind: input, shape index: {}]
  %s2 = inlined_call_operand.vmem [shape: f32[4,8,128], index: 2, kind: input, shape index: {}]
  %s3 = inlined_call_operand.vmem [shape: bf16[4,128,32], index: 3, kind: input, shape index: {}]
  %s4 = inlined_call_operand.vmem [shape: f32[4,1,32], index: 4, kind: input, shape index: {}]
  %s5 = inlined_call_operand.hbm [shape: f32[4,16,32], index: 5, kind: output, shape index: {}]
  %s6 = sld [smem:[#allocation0]]
  $region53: #{tpu_custom_call.1} parent=0
    _
  %s8 = ssub.s32 1, %s6
  %s9 = scalar_select 0, %s8, %s6
  $region1: #{tpu_custom_call.1} parent=0
    #allocation2 [shape = 'u8[32768]{0}', space=vmem, size = 0x8000, scoped, tag = 'output window, operand 0']
    #allocation3 [shape = 's32[2]{0}', space=sflag, size = 0x8, scoped, tag = 'scoped memory for tpu_custom_call.1']
    %10 = vsyncpa [#allocation3], 0
    %s11 = scalar_lea.sflag [#allocation3], 1
    %12 = vsyncpa %s11, 0
    loop: start=0, step=1, limit=4
    $region2: #{tpu_custom_call.1} parent=1 // loop_pre_header
      _
    $region3: #{tpu_custom_call.1} parent=1 // loop_header
      %s14 = sphi 0, %s18
      %p15 = scmp.ge.s32.totalorder %s14, 4
      %s22 = sphi 0, %s22
      %s24 = sphi 0, %s22
      %s25 = sphi 0, %s24
      %s39 = sphi 0, %s25
      %s45 = sphi 0, %s47
      %s48 = sphi 0, %s45
      %s49 = sphi 0, %s48
      %s65 = sphi 0, %s49
      %s71 = sphi 0, %s73
      %s74 = sphi 0, %s71
      %s75 = sphi 0, %s74
      %s91 = sphi 0, %s75
      %s97 = sphi 0, %s99
      %s100 = sphi 0, %s97
      %s101 = sphi 0, %s100
      %s117 = sphi 0, %s101
      %s121 = sphi 0, %s121
      %s123 = sphi 0, %s121
      %s124 = sphi 0, %s123
      %s138 = sphi 0, %s124
      %s144 = sphi 0, %s146
      %s147 = sphi 0, %s144
      %s148 = sphi 0, %s147
      %s164 = sphi 0, %s148
    $region4: #{tpu_custom_call.1} parent=1 // loop_header_branch
      %17 = sbr.rel (%p15) target = $region8
    $region5: #{tpu_custom_call.1} parent=1 // loop_body
      %s19 = ssub.s32 %s14, 1
      %s20 = ssub.s32 %s14, 2
      %s21 = sadd.s32 %s14, 1
      %s23 = sadd.s32 %s22, 1
      %p26 = scmp.eq.s32.totalorder %s14, 1
      %p27 = scmp.ne.s32.totalorder %s22, %s24
      %p28 = scmp.eq.s32.totalorder %s14, 0
      %p29 = por %p27, %p28
      %p30 = scmp.ne.s32.totalorder %s22, %s24
      %p31 = scmp.eq.s32.totalorder %s19, 1
      %p32 = por %p30, %p31
      %p33 = scmp.ne.s32.totalorder %s24, %s25
      %p34 = scmp.eq.s32.totalorder %s19, 0
      %p35 = por %p33, %p34
      %p36 = scmp.ne.s32.totalorder %s24, %s25
      %p37 = scmp.eq.s32.totalorder %s20, 1
      %p38 = por %p36, %p37
      %p40 = scmp.ne.s32.totalorder %s25, %s39
      %p41 = scmp.eq.s32.totalorder %s20, 0
      %p42 = por %p40, %p41
      %s43 = ssub.s32 %s14, %s21
      %p44 = scmp.eq.s32.totalorder %s43, 0
      %s46 = sadd.s32 %s45, 1
      %s47 = scalar_select %p44, %s45, %s46
      %p50 = pneg %p44
      %p51 = scmp.eq.s32.totalorder %s14, 1
      %p52 = por %p50, %p51
      %p53 = scmp.ne.s32.totalorder %s45, %s48
      %p54 = scmp.eq.s32.totalorder %s14, 0
      %p55 = por %p53, %p54
      %p56 = scmp.ne.s32.totalorder %s45, %s48
      %p57 = scmp.eq.s32.totalorder %s19, 1
      %p58 = por %p56, %p57
      %p59 = scmp.ne.s32.totalorder %s48, %s49
      %p60 = scmp.eq.s32.totalorder %s19, 0
      %p61 = por %p59, %p60
      %p62 = scmp.ne.s32.totalorder %s48, %s49
      %p63 = scmp.eq.s32.totalorder %s20, 1
      %p64 = por %p62, %p63
      %p66 = scmp.ne.s32.totalorder %s49, %s65
      %p67 = scmp.eq.s32.totalorder %s20, 0
      %p68 = por %p66, %p67
      %s69 = ssub.s32 %s14, %s21
      %p70 = scmp.eq.s32.totalorder %s69, 0
      %s72 = sadd.s32 %s71, 1
      %s73 = scalar_select %p70, %s71, %s72
      %p76 = pneg %p70
      %p77 = scmp.eq.s32.totalorder %s14, 1
      %p78 = por %p76, %p77
      %p79 = scmp.ne.s32.totalorder %s71, %s74
      %p80 = scmp.eq.s32.totalorder %s14, 0
      %p81 = por %p79, %p80
      %p82 = scmp.ne.s32.totalorder %s71, %s74
      %p83 = scmp.eq.s32.totalorder %s19, 1
      %p84 = por %p82, %p83
      %p85 = scmp.ne.s32.totalorder %s74, %s75
      %p86 = scmp.eq.s32.totalorder %s19, 0
      %p87 = por %p85, %p86
      %p88 = scmp.ne.s32.totalorder %s74, %s75
      %p89 = scmp.eq.s32.totalorder %s20, 1
      %p90 = por %p88, %p89
      %p92 = scmp.ne.s32.totalorder %s75, %s91
      %p93 = scmp.eq.s32.totalorder %s20, 0
      %p94 = por %p92, %p93
      %s95 = ssub.s32 %s14, %s21
      %p96 = scmp.eq.s32.totalorder %s95, 0
      %s98 = sadd.s32 %s97, 1
      %s99 = scalar_select %p96, %s97, %s98
      %p102 = pneg %p96
      %p103 = scmp.eq.s32.totalorder %s14, 1
      %p104 = por %p102, %p103
      %p105 = scmp.ne.s32.totalorder %s97, %s100
      %p106 = scmp.eq.s32.totalorder %s14, 0
      %p107 = por %p105, %p106
      %p108 = scmp.ne.s32.totalorder %s97, %s100
      %p109 = scmp.eq.s32.totalorder %s19, 1
      %p110 = por %p108, %p109
      %p111 = scmp.ne.s32.totalorder %s100, %s101
      %p112 = scmp.eq.s32.totalorder %s19, 0
      %p113 = por %p111, %p112
      %p114 = scmp.ne.s32.totalorder %s100, %s101
      %p115 = scmp.eq.s32.totalorder %s20, 1
      %p116 = por %p114, %p115
      %p118 = scmp.ne.s32.totalorder %s101, %s117
      %p119 = scmp.eq.s32.totalorder %s20, 0
      %p120 = por %p118, %p119
      %s122 = sadd.s32 %s121, 1
      %p125 = scmp.eq.s32.totalorder %s14, 1
      %p126 = scmp.ne.s32.totalorder %s121, %s123
      %p127 = scmp.eq.s32.totalorder %s14, 0
      %p128 = por %p126, %p127
      %p129 = scmp.ne.s32.totalorder %s121, %s123
      %p130 = scmp.eq.s32.totalorder %s19, 1
      %p131 = por %p129, %p130
      %p132 = scmp.ne.s32.totalorder %s123, %s124
      %p133 = scmp.eq.s32.totalorder %s19, 0
      %p134 = por %p132, %p133
      %p135 = scmp.ne.s32.totalorder %s123, %s124
      %p136 = scmp.eq.s32.totalorder %s20, 1
      %p137 = por %p135, %p136
      %p139 = scmp.ne.s32.totalorder %s124, %s138
      %p140 = scmp.eq.s32.totalorder %s20, 0
      %p141 = por %p139, %p140
      %s142 = ssub.s32 %s14, %s21
      %p143 = scmp.eq.s32.totalorder %s142, 0
      %s145 = sadd.s32 %s144, 1
      %s146 = scalar_select %p143, %s144, %s145
      %p149 = pneg %p143
      %p150 = scmp.eq.s32.totalorder %s14, 1
      %p151 = por %p149, %p150
      %p152 = scmp.ne.s32.totalorder %s144, %s147
      %p153 = scmp.eq.s32.totalorder %s14, 0
      %p154 = por %p152, %p153
      %p155 = scmp.ne.s32.totalorder %s144, %s147
      %p156 = scmp.eq.s32.totalorder %s19, 1
      %p157 = por %p155, %p156
      %p158 = scmp.ne.s32.totalorder %s147, %s148
      %p159 = scmp.eq.s32.totalorder %s19, 0
      %p160 = por %p158, %p159
      %p161 = scmp.ne.s32.totalorder %s147, %s148
      %p162 = scmp.eq.s32.totalorder %s20, 1
      %p163 = por %p161, %p162
      %p165 = scmp.ne.s32.totalorder %s148, %s164
      %p166 = scmp.eq.s32.totalorder %s20, 0
      %p167 = por %p165, %p166
      %p168 = scmp.le.s32.totalorder 1, %s14
      %p169 = scmp.lt.s32.totalorder %s14, 3
      %p170 = pnand %p168, %p169
      %p171 = pneg %p170
      // Predicated region
      $region9: #{tpu_custom_call.1} parent=5 // pred_check
        _
      $region10: #{tpu_custom_call.1} parent=5 // pred_check_branch
        %173 = sbr.rel (%p170) target = $region12
      $region11: #{tpu_custom_call.1} parent=5 // pred_region
        %s174 = ssub.s32 %s14, 1
        // Predicated region
        $region13: #{tpu_custom_call.1} parent=11 // pred_check
          %p175 = pneg %p35
        $region14: #{tpu_custom_call.1} parent=11 // pred_check_branch
          %177 = sbr.rel (%p175) target = $region16
        $region15: #{tpu_custom_call.1} parent=11 // pred_region
          _
        $region16: #{tpu_custom_call.1} parent=11 // pred_fallthru
          _
        // Predicated region
        $region17: #{tpu_custom_call.1} parent=11 // pred_check
          %p178 = pneg %p134
        $region18: #{tpu_custom_call.1} parent=11 // pred_check_branch
          %180 = sbr.rel (%p178) target = $region20
        $region19: #{tpu_custom_call.1} parent=11 // pred_region
          _
        $region20: #{tpu_custom_call.1} parent=11 // pred_fallthru
          _
      $region12: #{tpu_custom_call.1} parent=5 // pred_fallthru
        _
      %p181 = scmp.lt.s32.totalorder %s14, 2
      // Predicated region
      $region21: #{tpu_custom_call.1} parent=5 // pred_check
        %p182 = pneg %p181
      $region22: #{tpu_custom_call.1} parent=5 // pred_check_branch
        %184 = sbr.rel (%p182) target = $region24
      $region23: #{tpu_custom_call.1} parent=5 // pred_region
        // Predicated region
        $region25: #{tpu_custom_call.1} parent=23 // pred_check
          %p185 = pneg %p55
        $region26: #{tpu_custom_call.1} parent=23 // pred_check_branch
          %187 = sbr.rel (%p185) target = $region28
        $region27: #{tpu_custom_call.1} parent=23 // pred_region
          %s188 = smul.u32 2, %s14
          %p189 = scmp.lt.s32.totalorder %s188, 3
          %s190 = scalar_select %p189, %s188, 3
          %s191 = smul.addr %s190, 4
          %s192 = smul.addr %s191, 4
          %s193 = scalar_lea.vmem %s1, %s192
          %s194 = smul.u32 2, %s14
        $region28: #{tpu_custom_call.1} parent=23 // pred_fallthru
          _
        // Predicated region
        $region29: #{tpu_custom_call.1} parent=23 // pred_check
          %p195 = pneg %p81
        $region30: #{tpu_custom_call.1} parent=23 // pred_check_branch
          %197 = sbr.rel (%p195) target = $region32
        $region31: #{tpu_custom_call.1} parent=23 // pred_region
          %s198 = smul.u32 2, %s14
          %p199 = scmp.lt.s32.totalorder %s198, 3
          %s200 = scalar_select %p199, %s198, 3
          %s201 = smul.addr %s200, 8
          %s202 = scalar_lea.vmem %s2, %s201
          %s203 = smul.u32 2, %s14
        $region32: #{tpu_custom_call.1} parent=23 // pred_fallthru
          _
        // Predicated region
        $region33: #{tpu_custom_call.1} parent=23 // pred_check
          %p204 = pneg %p107
        $region34: #{tpu_custom_call.1} parent=23 // pred_check_branch
          %206 = sbr.rel (%p204) target = $region36
        $region35: #{tpu_custom_call.1} parent=23 // pred_region
          %s207 = smul.u32 2, %s14
          %p208 = scmp.lt.s32.totalorder %s207, 3
          %s209 = scalar_select %p208, %s207, 3
          %s210 = smul.addr %s209, 16
          %s211 = smul.addr %s210, 4
          %s212 = scalar_lea.vmem %s3, %s211
          %s213 = smul.u32 2, %s14
        $region36: #{tpu_custom_call.1} parent=23 // pred_fallthru
          _
      $region24: #{tpu_custom_call.1} parent=5 // pred_fallthru
        _
      %p214 = scmp.le.s32.totalorder 1, %s14
      %p215 = scmp.lt.s32.totalorder %s14, 3
      %p216 = pnand %p214, %p215
      %p217 = pneg %p216
      // Predicated region
      $region37: #{tpu_custom_call.1} parent=5 // pred_check
        _
      $region38: #{tpu_custom_call.1} parent=5 // pred_check_branch
        %219 = sbr.rel (%p216) target = $region40
      $region39: #{tpu_custom_call.1} parent=5 // pred_region
        %s220 = ssub.s32 %s14, 1
        %p221 = pneg %p35
        %p222 = pneg %p32
        %s223 = smul.u32 2, %s19
        %p224 = scmp.lt.s32.totalorder %s223, 3
        %s225 = scalar_select %p224, %s223, 3
        %s226 = smul.addr %s225, 4
        %s227 = smul.addr %s226, 4
        %s228 = scalar_lea.vmem %s1, %s227
        %p229 = pneg %p61
        %p230 = pneg %p58
        %s231 = smul.u32 2, %s19
        %p232 = scmp.lt.s32.totalorder %s231, 3
        %s233 = scalar_select %p232, %s231, 3
        %s234 = smul.addr %s233, 8
        %s235 = scalar_lea.vmem %s2, %s234
        %p236 = pneg %p87
        %p237 = pneg %p84
        %s238 = smul.u32 2, %s19
        %p239 = scmp.lt.s32.totalorder %s238, 3
        %s240 = scalar_select %p239, %s238, 3
        %s241 = smul.addr %s240, 16
        %s242 = smul.addr %s241, 4
        %s243 = scalar_lea.vmem %s3, %s242
        %p244 = pneg %p113
        %p245 = pneg %p110
        %p246 = pneg %p134
        %p247 = pneg %p131
        %p248 = pneg %p160
        %p249 = pneg %p157
        %s250 = sand.u32 %s147, 1
        %s251 = scalar_lea.sflag [#allocation3], %s250
        %s252 = sand.u32 %s147, 1
        %s253 = smul.addr %s252, 32
        %s254 = scalar_lea.vmem [#allocation2], %s253
        %s255 = smul.u32 2, %s19
        %p256 = scmp.lt.s32.totalorder %s255, 3
        %s257 = scalar_select %p256, %s255, 3
        %s258 = smul.addr %s257, 4
        %s259 = smul.addr %s258, 4
        %s260 = scalar_lea.vmem %s1, %s259
        %s261 = smul.u32 2, %s19
        %s262 = smul.u32 2, %s19
        %p263 = scmp.lt.s32.totalorder %s262, 3
        %s264 = scalar_select %p263, %s262, 3
        %s265 = smul.addr %s264, 8
        %s266 = scalar_lea.vmem %s2, %s265
        %s267 = smul.u32 2, %s19
        %s268 = smul.u32 2, %s19
        %p269 = scmp.lt.s32.totalorder %s268, 3
        %s270 = scalar_select %p269, %s268, 3
        %s271 = smul.addr %s270, 16
        %s272 = smul.addr %s271, 4
        %s273 = scalar_lea.vmem %s3, %s272
        %s274 = smul.u32 2, %s19
        %s275 = smul.u32 2, %s19
        %s277 = smul.u32 %s19, 2
        %v278 = vld [vmem:[%s0] sm:$0xf]
        %v279 = vld [vmem:[%s0 + $0x4] sm:$0xf]
        %v280 = vld [vmem:[%s266] sm:$0xff]
        %v281 = vld [vmem:[%s260] sm:$0xf]
        %v282 = vld [vmem:[%s260 + $0x4] sm:$0xf]
        %v283 = vld [vmem:[%s260 + $0x8] sm:$0xf]
        %v284 = vld [vmem:[%s260 + $0xc] sm:$0xf]
        %v287 = vunpack.c.l.b16 %v278
        %v288 = vunpack.c.l.b16 %v279
        %v289 = vpack.c.b16 %v288, %v287
        %v294 = vunpack.c.l.b16 %v281
        %v295 = vunpack.c.l.b16 %v282
        %v296 = vunpack.c.l.b16 %v283
        %v297 = vunpack.c.l.b16 %v284
        %v298 = vpack.c.b16 %v295, %v294
        %v299 = vpack.c.b16 %v297, %v296
        %vm302 = vcmask 261120
        %v304 = vsel %vm302, %v289, 0
        %306 = vmatprep.subr.bf16.mxu0 0
        %307 = vmatpush1.bf16.msra.mxu0 0
        %308 = vmatprep.subr.bf16.mxu0 0
        %309 = vmatpush1.bf16.msra.mxu0 0
        %310 = vmatprep.subr.bf16.mxu0 0
        %311 = vmatpush1.bf16.msra.mxu0 0
        %312 = vmatprep.subr.bf16.mxu0 0
        %313 = vmatpush1.bf16.msra.mxu0 0
        %314 = vmatprep.subr.bf16.mxu0 0
        %315 = vmatpush1.bf16.msra.mxu0 0
        %316 = vmatprep.subr.bf16.mxu0 0
        %317 = vmatpush1.bf16.msra.mxu0 0
        %318 = vmatprep.subr.bf16.mxu0 0
        %319 = vmatpush1.bf16.msra.mxu0 %v299
        %320 = vmatprep.subr.bf16.mxu0 0
        %321 = vmatpush1.bf16.msra.mxu0 %v298
        %322 = vmatprep.subr.bf16.mxu0 0
        %323 = vmatpush2.bf16.msra.mxu0 0
        %324 = vmatprep.subr.bf16.mxu0 0
        %325 = vmatpush2.bf16.msra.mxu0 0
        %326 = vmatprep.subr.bf16.mxu0 0
        %327 = vmatpush2.bf16.msra.mxu0 0
        %328 = vmatprep.subr.bf16.mxu0 0
        %329 = vmatpush2.bf16.msra.mxu0 0
        %330 = vmatprep.subr.bf16.mxu0 0
        %331 = vmatpush2.bf16.msra.mxu0 0
        %332 = vmatprep.subr.bf16.mxu0 0
        %333 = vmatpush2.bf16.msra.mxu0 0
        %334 = vmatprep.subr.bf16.mxu0 0
        %335 = vmatpush2.bf16.msra.mxu0 0
        %336 = vmatprep.subr.bf16.mxu0 0
        %337 = vmatpush2.bf16.msra.mxu0 0
        %338 = vmatprep.mubr.bf16.mxu0 0
        %339 = vmatmul.mubr.bf16.gmra.mxu0 %v304
        %v340 = vpop.f32.mrf.mxu0
        %v341 = vadd.f32 %v280, %v340
        %v342 = vpop.f32.mrf.mxu0
        %v343 = vpop.f32.mrf.mxu0
        %v344 = vadd.f32 %v280, %v343
        %v345 = vpop.f32.mrf.mxu0
        %346 = vdwg.mxu0
        %v347 = vtanh.pop %v341
        %v348 = vtanh.pop %v344
        %v349 = vpack.c.bf16 %v348, %v347
        %v350 = vld [vmem:[%s273] sm:$0xf]
        %v351 = vld [vmem:[%s273 + $0x4] sm:$0xf]
        %v352 = vld [vmem:[%s273 + $0x8] sm:$0xf]
        %v353 = vld [vmem:[%s273 + $0xc] sm:$0xf]
        %v354 = vld [vmem:[%s273 + $0x10] sm:$0xf]
        %v355 = vld [vmem:[%s273 + $0x14] sm:$0xf]
        %v356 = vld [vmem:[%s273 + $0x18] sm:$0xf]
        %v357 = vld [vmem:[%s273 + $0x1c] sm:$0xf]
        %v358 = vld [vmem:[%s273 + $0x20] sm:$0xf]
        %v359 = vld [vmem:[%s273 + $0x24] sm:$0xf]
        %v360 = vld [vmem:[%s273 + $0x28] sm:$0xf]
        %v361 = vld [vmem:[%s273 + $0x2c] sm:$0xf]
        %v362 = vld [vmem:[%s273 + $0x30] sm:$0xf]
        %v363 = vld [vmem:[%s273 + $0x34] sm:$0xf]
        %v364 = vld [vmem:[%s273 + $0x38] sm:$0xf]
        %v365 = vld [vmem:[%s273 + $0x3c] sm:$0xf]
        %s366 = scalar_lea.vmem %s4, %s277
        %v367 = vld [vmem:[%s366] sm:$0x1]
        %v369 = vlaneseq
        %v370 = vshrl.u32 %v369, 7
        %v371 = vsub.s32 0, %v370
        %v372 = vrot.slane %v367, %v371
        %v390 = vunpack.c.l.b16 %v350
        %v391 = vunpack.c.l.b16 %v351
        %v392 = vunpack.c.l.b16 %v352
        %v393 = vunpack.c.l.b16 %v353
        %v394 = vunpack.c.l.b16 %v354
        %v395 = vunpack.c.l.b16 %v355
        %v396 = vunpack.c.l.b16 %v356
        %v397 = vunpack.c.l.b16 %v357
        %v398 = vunpack.c.l.b16 %v358
        %v399 = vunpack.c.l.b16 %v359
        %v400 = vunpack.c.l.b16 %v360
        %v401 = vunpack.c.l.b16 %v361
        %v402 = vunpack.c.l.b16 %v362
        %v403 = vunpack.c.l.b16 %v363
        %v404 = vunpack.c.l.b16 %v364
        %v405 = vunpack.c.l.b16 %v365
        %v406 = vpack.c.b16 %v391, %v390
        %v407 = vpack.c.b16 %v393, %v392
        %v408 = vpack.c.b16 %v395, %v394
        %v409 = vpack.c.b16 %v397, %v396
        %v410 = vpack.c.b16 %v399, %v398
        %v411 = vpack.c.b16 %v401, %v400
        %v412 = vpack.c.b16 %v403, %v402
        %v413 = vpack.c.b16 %v405, %v404
        %422 = vmatprep.subr.bf16.mxu0 0
        %423 = vmatpush1.bf16.msra.mxu0 %v413
        %424 = vmatprep.subr.bf16.mxu0 0
        %425 = vmatpush1.bf16.msra.mxu0 %v412
        %426 = vmatprep.subr.bf16.mxu0 0
        %427 = vmatpush1.bf16.msra.mxu0 %v411
        %428 = vmatprep.subr.bf16.mxu0 0
        %429 = vmatpush1.bf16.msra.mxu0 %v410
        %430 = vmatprep.subr.bf16.mxu0 0
        %431 = vmatpush1.bf16.msra.mxu0 %v409
        %432 = vmatprep.subr.bf16.mxu0 0
        %433 = vmatpush1.bf16.msra.mxu0 %v408
        %434 = vmatprep.subr.bf16.mxu0 0
        %435 = vmatpush1.bf16.msra.mxu0 %v407
        %436 = vmatprep.subr.bf16.mxu0 0
        %437 = vmatpush1.bf16.msra.mxu0 %v406
        %438 = vmatprep.subr.bf16.mxu0 0
        %439 = vmatpush2.bf16.msra.mxu0 0
        %440 = vmatprep.subr.bf16.mxu0 0
        %441 = vmatpush2.bf16.msra.mxu0 0
        %442 = vmatprep.subr.bf16.mxu0 0
        %443 = vmatpush2.bf16.msra.mxu0 0
        %444 = vmatprep.subr.bf16.mxu0 0
        %445 = vmatpush2.bf16.msra.mxu0 0
        %446 = vmatprep.subr.bf16.mxu0 0
        %447 = vmatpush2.bf16.msra.mxu0 0
        %448 = vmatprep.subr.bf16.mxu0 0
        %449 = vmatpush2.bf16.msra.mxu0 0
        %450 = vmatprep.subr.bf16.mxu0 0
        %451 = vmatpush2.bf16.msra.mxu0 0
        %452 = vmatprep.subr.bf16.mxu0 0
        %453 = vmatpush2.bf16.msra.mxu0 0
        %454 = vmatprep.mubr.bf16.mxu0 0
        %455 = vmatmul.mubr.bf16.gmra.mxu0 %v349
        %v456 = vpop.f32.mrf.mxu0
        %v457 = vadd.f32 %v372, %v456
        %v458 = vpop.f32.mrf.mxu0
        %v459 = vpop.f32.mrf.mxu0
        %v460 = vadd.f32 %v372, %v459
        %v461 = vpop.f32.mrf.mxu0
        %462 = vdwg.mxu0
        %463 = vst.msk [vmem:[%s254] sm:$0xff] %vm302, %v457
        %464 = vst.msk [vmem:[%s254 + $0x8] sm:$0xff] %vm302, %v460
        %s465 = scalar_lea.vmem %s266, 8
        %v466 = vld [vmem:[%s465] sm:$0xff]
        %s467 = scalar_lea.vmem %s260, 16
        %v468 = vld [vmem:[%s467] sm:$0xf]
        %v469 = vld [vmem:[%s467 + $0x4] sm:$0xf]
        %v470 = vld [vmem:[%s467 + $0x8] sm:$0xf]
        %v471 = vld [vmem:[%s467 + $0xc] sm:$0xf]
        %v476 = vunpack.c.l.b16 %v468
        %v477 = vunpack.c.l.b16 %v469
        %v478 = vunpack.c.l.b16 %v470
        %v479 = vunpack.c.l.b16 %v471
        %v480 = vpack.c.b16 %v477, %v476
        %v481 = vpack.c.b16 %v479, %v478
        %484 = vmatprep.subr.bf16.mxu0 0
        %485 = vmatpush1.bf16.msra.mxu0 0
        %486 = vmatprep.subr.bf16.mxu0 0
        %487 = vmatpush1.bf16.msra.mxu0 0
        %488 = vmatprep.subr.bf16.mxu0 0
        %489 = vmatpush1.bf16.msra.mxu0 0
        %490 = vmatprep.subr.bf16.mxu0 0
        %491 = vmatpush1.bf16.msra.mxu0 0
        %492 = vmatprep.subr.bf16.mxu0 0
        %493 = vmatpush1.bf16.msra.mxu0 0
        %494 = vmatprep.subr.bf16.mxu0 0
        %495 = vmatpush1.bf16.msra.mxu0 0
        %496 = vmatprep.subr.bf16.mxu0 0
        %497 = vmatpush1.bf16.msra.mxu0 %v481
        %498 = vmatprep.subr.bf16.mxu0 0
        %499 = vmatpush1.bf16.msra.mxu0 %v480
        %500 = vmatprep.subr.bf16.mxu0 0
        %501 = vmatpush2.bf16.msra.mxu0 0
        %502 = vmatprep.subr.bf16.mxu0 0
        %503 = vmatpush2.bf16.msra.mxu0 0
        %504 = vmatprep.subr.bf16.mxu0 0
        %505 = vmatpush2.bf16.msra.mxu0 0
        %506 = vmatprep.subr.bf16.mxu0 0
        %507 = vmatpush2.bf16.msra.mxu0 0
        %508 = vmatprep.subr.bf16.mxu0 0
        %509 = vmatpush2.bf16.msra.mxu0 0
        %510 = vmatprep.subr.bf16.mxu0 0
        %511 = vmatpush2.bf16.msra.mxu0 0
        %512 = vmatprep.subr.bf16.mxu0 0
        %513 = vmatpush2.bf16.msra.mxu0 0
        %514 = vmatprep.subr.bf16.mxu0 0
        %515 = vmatpush2.bf16.msra.mxu0 0
        %516 = vmatprep.mubr.bf16.mxu0 0
        %517 = vmatmul.mubr.bf16.gmra.mxu0 %v304
        %v518 = vpop.f32.mrf.mxu0
        %v519 = vadd.f32 %v466, %v518
        %v520 = vpop.f32.mrf.mxu0
        %v521 = vpop.f32.mrf.mxu0
        %v522 = vadd.f32 %v466, %v521
        %v523 = vpop.f32.mrf.mxu0
        %524 = vdwg.mxu0
        %v525 = vtanh.pop %v519
        %v526 = vtanh.pop %v522
        %v527 = vpack.c.bf16 %v526, %v525
        %s528 = scalar_lea.vmem %s273, 64
        %v529 = vld [vmem:[%s528] sm:$0xf]
        %v530 = vld [vmem:[%s528 + $0x4] sm:$0xf]
        %v531 = vld [vmem:[%s528 + $0x8] sm:$0xf]
        %v532 = vld [vmem:[%s528 + $0xc] sm:$0xf]
        %v533 = vld [vmem:[%s528 + $0x10] sm:$0xf]
        %v534 = vld [vmem:[%s528 + $0x14] sm:$0xf]
        %v535 = vld [vmem:[%s528 + $0x18] sm:$0xf]
        %v536 = vld [vmem:[%s528 + $0x1c] sm:$0xf]
        %v537 = vld [vmem:[%s528 + $0x20] sm:$0xf]
        %v538 = vld [vmem:[%s528 + $0x24] sm:$0xf]
        %v539 = vld [vmem:[%s528 + $0x28] sm:$0xf]
        %v540 = vld [vmem:[%s528 + $0x2c] sm:$0xf]
        %v541 = vld [vmem:[%s528 + $0x30] sm:$0xf]
        %v542 = vld [vmem:[%s528 + $0x34] sm:$0xf]
        %v543 = vld [vmem:[%s528 + $0x38] sm:$0xf]
        %v544 = vld [vmem:[%s528 + $0x3c] sm:$0xf]
        %s545 = sadd.s32 %s277, 1
        %s546 = scalar_lea.vmem %s4, %s545
        %v547 = vld [vmem:[%s546] sm:$0x1]
        %v549 = vlaneseq
        %v550 = vshrl.u32 %v549, 7
        %v551 = vsub.s32 0, %v550
        %v552 = vrot.slane %v547, %v551
        %v570 = vunpack.c.l.b16 %v529
        %v571 = vunpack.c.l.b16 %v530
        %v572 = vunpack.c.l.b16 %v531
        %v573 = vunpack.c.l.b16 %v532
        %v574 = vunpack.c.l.b16 %v533
        %v575 = vunpack.c.l.b16 %v534
        %v576 = vunpack.c.l.b16 %v535
        %v577 = vunpack.c.l.b16 %v536
        %v578 = vunpack.c.l.b16 %v537
        %v579 = vunpack.c.l.b16 %v538
        %v580 = vunpack.c.l.b16 %v539
        %v581 = vunpack.c.l.b16 %v540
        %v582 = vunpack.c.l.b16 %v541
        %v583 = vunpack.c.l.b16 %v542
        %v584 = vunpack.c.l.b16 %v543
        %v585 = vunpack.c.l.b16 %v544
        %v586 = vpack.c.b16 %v571, %v570
        %v587 = vpack.c.b16 %v573, %v572
        %v588 = vpack.c.b16 %v575, %v574
        %v589 = vpack.c.b16 %v577, %v576
        %v590 = vpack.c.b16 %v579, %v578
        %v591 = vpack.c.b16 %v581, %v580
        %v592 = vpack.c.b16 %v583, %v582
        %v593 = vpack.c.b16 %v585, %v584
        %602 = vmatprep.subr.bf16.mxu0 0
        %603 = vmatpush1.bf16.msra.mxu0 %v593
        %604 = vmatprep.subr.bf16.mxu0 0
        %605 = vmatpush1.bf16.msra.mxu0 %v592
        %606 = vmatprep.subr.bf16.mxu0 0
        %607 = vmatpush1.bf16.msra.mxu0 %v591
        %608 = vmatprep.subr.bf16.mxu0 0
        %609 = vmatpush1.bf16.msra.mxu0 %v590
        %610 = vmatprep.subr.bf16.mxu0 0
        %611 = vmatpush1.bf16.msra.mxu0 %v589
        %612 = vmatprep.subr.bf16.mxu0 0
        %613 = vmatpush1.bf16.msra.mxu0 %v588
        %614 = vmatprep.subr.bf16.mxu0 0
        %615 = vmatpush1.bf16.msra.mxu0 %v587
        %616 = vmatprep.subr.bf16.mxu0 0
        %617 = vmatpush1.bf16.msra.mxu0 %v586
        %618 = vmatprep.subr.bf16.mxu0 0
        %619 = vmatpush2.bf16.msra.mxu0 0
        %620 = vmatprep.subr.bf16.mxu0 0
        %621 = vmatpush2.bf16.msra.mxu0 0
        %622 = vmatprep.subr.bf16.mxu0 0
        %623 = vmatpush2.bf16.msra.mxu0 0
        %624 = vmatprep.subr.bf16.mxu0 0
        %625 = vmatpush2.bf16.msra.mxu0 0
        %626 = vmatprep.subr.bf16.mxu0 0
        %627 = vmatpush2.bf16.msra.mxu0 0
        %628 = vmatprep.subr.bf16.mxu0 0
        %629 = vmatpush2.bf16.msra.mxu0 0
        %630 = vmatprep.subr.bf16.mxu0 0
        %631 = vmatpush2.bf16.msra.mxu0 0
        %632 = vmatprep.subr.bf16.mxu0 0
        %633 = vmatpush2.bf16.msra.mxu0 0
        %634 = vmatprep.mubr.bf16.mxu0 0
        %635 = vmatmul.mubr.bf16.gmra.mxu0 %v527
        %v636 = vpop.f32.mrf.mxu0
        %v637 = vadd.f32 %v552, %v636
        %v638 = vpop.f32.mrf.mxu0
        %v639 = vpop.f32.mrf.mxu0
        %v640 = vadd.f32 %v552, %v639
        %v641 = vpop.f32.mrf.mxu0
        %642 = vdwg.mxu0
        %s643 = scalar_lea.vmem %s254, 16 [#allocation2]
        %644 = vst.msk [vmem:[%s643] sm:$0xff] %vm302, %v637
        %645 = vst.msk [vmem:[%s643 + $0x8] sm:$0xff] %vm302, %v640
        %s646 = sand.u32 %s147, 1
        %s647 = scalar_lea.sflag [#allocation3], %s646
        %s648 = sand.u32 %s147, 1
        %s649 = smul.addr %s648, 32
        %s650 = scalar_lea.vmem [#allocation2], %s649
        // Predicated region
        $region41: #{tpu_custom_call.1} parent=39 // pred_check
          %p651 = pneg %p157
        $region42: #{tpu_custom_call.1} parent=39 // pred_check_branch
          %653 = sbr.rel (%p651) target = $region44
        $region43: #{tpu_custom_call.1} parent=39 // pred_region
          %s654 = smul.u32 2, %s19
          %s656 = ssub.s32 512, 512
          %657 = vsyncadd %s647, %s656
          %s658 = smul.addr %s654, 2
          %s659 = smul.addr %s658, 128
          %s660 = scalar_lea.hbm %s5, %s659
          %s661 = sshll.u32 %s650, 4
          %s662 = int_to_ptr.vmem [resolvable:$true] %s661
          %667 = dma.vmem_to_hbm [thread:$0]  %s662, 512, %s660, %s647, 128, 128, 8
        $region44: #{tpu_custom_call.1} parent=39 // pred_fallthru
          _
      $region40: #{tpu_custom_call.1} parent=5 // pred_fallthru
        _
      %p668 = scmp.le.s32.totalorder 2, %s14
      // Predicated region
      $region45: #{tpu_custom_call.1} parent=5 // pred_check
        %p669 = pneg %p668
      $region46: #{tpu_custom_call.1} parent=5 // pred_check_branch
        %671 = sbr.rel (%p669) target = $region48
      $region47: #{tpu_custom_call.1} parent=5 // pred_region
        %s672 = ssub.s32 %s14, 2
        // Predicated region
        $region49: #{tpu_custom_call.1} parent=47 // pred_check
          %p673 = pneg %p163
        $region50: #{tpu_custom_call.1} parent=47 // pred_check_branch
          %675 = sbr.rel (%p673) target = $region52
        $region51: #{tpu_custom_call.1} parent=47 // pred_region
          %s676 = sand.u32 %s148, 1
          %s677 = scalar_lea.sflag [#allocation3], %s676
          %s678 = sand.u32 %s148, 1
          %s679 = smul.addr %s678, 32
          %s680 = scalar_lea.vmem [#allocation2], %s679
          %681 = dma.done %s677, 512
        $region52: #{tpu_custom_call.1} parent=47 // pred_fallthru
          _
      $region48: #{tpu_custom_call.1} parent=5 // pred_fallthru
        _
    $region6: #{tpu_custom_call.1} parent=1 // loop_footer
      %s18 = sadd.s32 1, %s14
    $region7: #{tpu_custom_call.1} parent=1 // loop_footer_branch
      %13 = sbr.rel target = $region3
    $region8: #{tpu_custom_call.1} parent=1 // loop_exit
      _
    %682 = vsyncpa [#allocation3], 1
    %s683 = scalar_lea.sflag [#allocation3], 1
    %684 = vsyncpa %s683, 1

</llo_original>
